<compile_context>
chip_gen: v7x
topology: tpu7x:2x2x1
jax: 0.10.0
libtpu: 0.0.40
codegen_flags: <defaults>
</compile_context>

<pallas_src>
import math

import jax
import jax.numpy as jnp
from jax.experimental import pallas as pl
from jax.experimental.pallas import tpu as pltpu


_TARGET_TILE_BYTES = 4 << 20   # per-buffer tile budget (amortizes ~0.35 us grid-step overhead)
_VMEM_LIMIT_BYTES = 40 << 20   # explicit scoped-VMEM cap; safe on v5e/v6e (128 MiB) and v7x (64 MiB/TC)
_LANE_CAP_BYTES = 8192         # max bytes per lane-dense row (2048 f32 lanes)


def _mask_kernel(x_ref, b_ref, o_ref):
    # x_ref: (TILE_R, TILE_L) tile; b_ref: (3, TILE_L) packed [lower, upper, replacement]
    x = x_ref[...]
    lb = b_ref[0:1, :]
    ub = b_ref[1:2, :]
    rep = b_ref[2:3, :]
    o_ref[...] = jnp.where((x >= lb) & (x <= ub), rep, x)


def _choose_lane(total, feat, itemsize, cap_bytes=_LANE_CAP_BYTES):
    """Lane width for the flattened view: a multiple of lcm(F, 128) (lane-dense and
    feature-periodic). Prefers a width that divides `total` (no tail); returns None
    when even one period does not fit in the input."""
    base = (feat * 128) // math.gcd(feat, 128)  # lcm(F, 128)
    if base > total:
        return None
    cap_elems = min(max(cap_bytes // itemsize, base), total)
    best_div = None
    best_any = None
    lane = base
    while lane <= cap_elems:
        best_any = lane
        if total % lane == 0:
            best_div = lane
        lane += base
    return best_div if best_div is not None else best_any


def _mask_2d(x2, bounds2, in_place=False):
    """x2: (R, L) lane-dense view; bounds2: (3, L) = [lower, upper, replacement]."""
    R, L = x2.shape
    itemsize = jnp.dtype(x2.dtype).itemsize

    # Lane tile: full L when it comfortably fits; otherwise a 128-multiple chunk.
    if L <= 128 or L * itemsize * 8 <= _TARGET_TILE_BYTES:
        tile_l = L
    else:
        tile_l = max((_TARGET_TILE_BYTES // (8 * itemsize)) // 128 * 128, 128)
        tile_l = min(tile_l, L)

    # Row tile: fill the per-buffer VMEM budget at sublane-friendly granularity.
    if R * tile_l * itemsize <= _TARGET_TILE_BYTES:
        tile_r = R
    else:
        tile_r = max(_TARGET_TILE_BYTES // (tile_l * itemsize), 8)
        tile_r = max((tile_r // 8) * 8, 8)
        tile_r = min(tile_r, R)

    # v7x megacore: ensure the parallel grid has >= 2 steps when possible so both
    # TensorCores (and their DMA paths) get work. No effect on v5e/v6e (1 TC).
    if pl.cdiv(R, tile_r) * pl.cdiv(L, tile_l) == 1 and R >= 16:
        tile_r = ((pl.cdiv(R, 2) + 7) // 8) * 8

    grid = (pl.cdiv(R, tile_r), pl.cdiv(L, tile_l))

    cost = pl.CostEstimate(
        flops=4 * R * L,  # 2 compares + and + select per element
        transcendentals=0,
        bytes_accessed=2 * R * L * itemsize + 3 * L * itemsize,
    )

    return pl.pallas_call(
        _mask_kernel,
        out_shape=jax.ShapeDtypeStruct((R, L), x2.dtype),
        grid_spec=pltpu.PrefetchScalarGridSpec(
            num_scalar_prefetch=0,
            grid=grid,
            in_specs=[
                pl.BlockSpec((tile_r, tile_l), lambda i, j: (i, j)),  # x tile
                pl.BlockSpec((3, tile_l), lambda i, j: (0, j)),       # packed bounds (row-resident)
            ],
            out_specs=pl.BlockSpec((tile_r, tile_l), lambda i, j: (i, j)),
        ),
        compiler_params=pltpu.CompilerParams(
            dimension_semantics=("parallel", "parallel"),
            vmem_limit_bytes=_VMEM_LIMIT_BYTES,
        ),
        cost_estimate=cost,
        input_output_aliases=({0: 0} if in_place else {}),
    )(x2, bounds2)


def mask_layer_forward(x, lower_bound, upper_bound, replacement_values, in_place=False):
    """x: [B, S, F]; bounds/replacement: [F] (or broadcastable to [F])."""
    B, S, F = x.shape
    dt = x.dtype
    lb = jnp.asarray(lower_bound, dtype=dt).reshape(F)
    ub = jnp.asarray(upper_bound, dtype=dt).reshape(F)
    rep = jnp.asarray(replacement_values, dtype=dt).reshape(F)

    total = B * S * F
    itemsize = jnp.dtype(dt).itemsize
    lane = _choose_lane(total, F, itemsize)

    if lane is None:
        # Input smaller than one lane-dense period (lcm(F,128) elements): a kernel launch
        # would be pure overhead -> plain fused elementwise.
        mask = (x >= lb[None, None, :]) & (x <= ub[None, None, :])
        return jnp.where(mask, rep[None, None, :], x)

    # Bounds pattern repeats exactly lane // F times along each lane-dense row.
    reps = lane // F
    bounds = jnp.stack(
        [jnp.tile(lb, reps), jnp.tile(ub, reps), jnp.tile(rep, reps)], axis=0
    )  # (3, lane)

    x_flat = x.reshape(total)
    prefix = (total // lane) * lane

    out_main = _mask_2d(
        x_flat[:prefix].reshape(prefix // lane, lane), bounds, in_place=in_place
    ).reshape(prefix)

    if prefix == total:
        return out_main.reshape(B, S, F)

    # Small tail (< lane elements, a multiple of F): fused jnp.where instead of a
    # narrow-lane (masked-store) kernel call. Only hit for awkward shapes where
    # (B*S) is not a multiple of lcm(F,128)/F.
    tail = x_flat[prefix:].reshape(-1, F)
    tail_out = jnp.where((tail >= lb) & (tail <= ub), rep, tail).reshape(-1)
    return jnp.concatenate([out_main, tail_out]).reshape(B, S, F)


def mask_layer_reference(x, lower_bound, upper_bound, replacement_values):
    F = x.shape[-1]
    lb = jnp.asarray(lower_bound, dtype=x.dtype).reshape(1, 1, F)
    ub = jnp.asarray(upper_bound, dtype=x.dtype).reshape(1, 1, F)
    rep = jnp.asarray(replacement_values, dtype=x.dtype).reshape(1, 1, F)
    mask = (x >= lb) & (x <= ub)
    return jnp.where(mask, rep, x)


if __name__ == "__main__":
    key = jax.random.PRNGKey(0)
    kx, kl, ku, kr = jax.random.split(key, 4)

    # Module forward implies [batch, seq, features].
    B, S, F = 2, 8, 32
    x = jax.random.normal(kx, (B, S, F), dtype=jnp.float32)

    # Deterministic "parameters" (module __init__ takes them as tensors of shape [F]).
    lo = jax.random.normal(kl, (F,), dtype=jnp.float32) - 0.5
    hi = lo + jnp.abs(jax.random.normal(ku, (F,), dtype=jnp.float32)) + 0.1
    rep = jax.random.normal(kr, (F,), dtype=jnp.float32)

    out = jax.block_until_ready(mask_layer_forward(x, lo, hi, rep))
    ref = mask_layer_reference(x, lo, hi, rep)
    assert out.shape == x.shape and out.dtype == x.dtype
    assert jnp.allclose(out, ref), "Pallas kernel mismatch vs reference (even shape)"

    # Awkward shape: exercises the lane-dense prefix kernel + jnp.where tail path
    # ((B*S) not a multiple of lcm(F,128)/F).
    B2, S2, F2 = 3, 3, 32
    x_odd = jax.random.normal(kx, (B2, S2, F2), dtype=jnp.float32)
    out_odd = jax.block_until_ready(mask_layer_forward(x_odd, lo, hi, rep))
    ref_odd = mask_layer_reference(x_odd, lo, hi, rep)
    assert jnp.allclose(out_odd, ref_odd), "Pallas kernel mismatch vs reference (odd shape)"

    print("KERNEL_OK")
</pallas_src>

<mosaic_0001>
module attributes {stable_mosaic.version = 11 : i64} {
  func.func @_mask_kernel(%arg0: i32, %arg1: i32, %arg2: memref<1x512xf32, #tpu.memory_space<vmem>>, %arg3: memref<3x512xf32, #tpu.memory_space<vmem>>, %arg4: memref<1x512xf32, #tpu.memory_space<vmem>>) attributes {dimension_semantics = [#tpu.dimension_semantics<parallel>, #tpu.dimension_semantics<parallel>], iteration_bounds = array<i64: 1, 1>, scalar_prefetch = 0 : i64, scratch_operands = 0 : i64, tpu.core_type = #tpu.core_type<tc>, window_params = [{transform_indices = @transform_0, window_bounds = array<i64: 1, 512>}, {transform_indices = @transform_1, window_bounds = array<i64: 3, 512>}, {transform_indices = @transform_2, window_bounds = array<i64: 1, 512>}]} {
    %c0 = arith.constant 0 : index
    %c0_0 = arith.constant 0 : index
    %0 = vector.load %arg2[%c0, %c0_0] : memref<1x512xf32, #tpu.memory_space<vmem>>, vector<1x512xf32>
    %c0_1 = arith.constant 0 : index
    %c0_2 = arith.constant 0 : index
    %1 = vector.load %arg3[%c0_1, %c0_2] : memref<3x512xf32, #tpu.memory_space<vmem>>, vector<1x512xf32>
    %c1 = arith.constant 1 : index
    %c0_3 = arith.constant 0 : index
    %2 = vector.load %arg3[%c1, %c0_3] : memref<3x512xf32, #tpu.memory_space<vmem>>, vector<1x512xf32>
    %c2 = arith.constant 2 : index
    %c0_4 = arith.constant 0 : index
    %3 = vector.load %arg3[%c2, %c0_4] : memref<3x512xf32, #tpu.memory_space<vmem>>, vector<1x512xf32>
    %4 = arith.cmpf oge, %0, %1 : vector<1x512xf32>
    %5 = arith.cmpf ole, %0, %2 : vector<1x512xf32>
    %6 = arith.andi %4, %5 : vector<1x512xi1>
    %7 = arith.select %6, %3, %0 : vector<1x512xi1>, vector<1x512xf32>
    %c0_5 = arith.constant 0 : index
    %c0_6 = arith.constant 0 : index
    %8 = vector.load %arg4[%c0_5, %c0_6] : memref<1x512xf32, #tpu.memory_space<vmem>>, vector<1x512xf32>
    tpu.vector_store %arg4[%c0_5, %c0_6], %7 {strides = array<i32>} : memref<1x512xf32, #tpu.memory_space<vmem>>, vector<1x512xf32>,
    return
  }
  func.func @transform_0(%arg0: i32, %arg1: i32) -> (i32, i32) {
    %c0_i32 = arith.constant 0 : i32
    return %arg0, %arg1 : i32, i32
  }
  func.func @transform_1(%arg0: i32, %arg1: i32) -> (i32, i32) {
    %c0_i32 = arith.constant 0 : i32
    %c0_i32_0 = arith.constant 0 : i32
    return %c0_i32, %arg1 : i32, i32
  }
  func.func @transform_2(%arg0: i32, %arg1: i32) -> (i32, i32) {
    %c0_i32 = arith.constant 0 : i32
    return %arg0, %arg1 : i32, i32
  }
}

</mosaic_0001>

<llo_original>
// kernel: tpu_custom_call.1
$region0: #{tpu_custom_call.1}
  #allocation0 [shape = 'u32[]', space=smem, size = 0x4, offset = 0x4, fixed_abs, tag = 'smem constant byte address 0x4 - core index']
  #allocation1 [shape = 'u32[144,128]{1,0:T(1,128)}', space=vmem, size = 0x12000, scoped, tag = 'internal scratch']
  %s0 = inlined_call_operand.hbm [shape: f32[1,512], index: 0, kind: input, shape index: {}]
  %s1 = inlined_call_operand.hbm [shape: f32[3,512], index: 1, kind: input, shape index: {}]
  %s2 = inlined_call_operand.hbm [shape: f32[1,512], index: 2, kind: output, shape index: {}]
  %s3 = sld [smem:[#allocation0]]
  $region26: #{tpu_custom_call.1} parent=0
    _
  %s5 = ssub.s32 1, %s3
  %s6 = scalar_select 0, %s5, %s3
  $region1: #{tpu_custom_call.1} parent=0
    #allocation2 [shape = 'u8[2048]{0}', space=vmem, size = 0x800, scoped, tag = 'input window, operand 0, single buffered']
    #allocation3 [shape = 's32[1]{0}', space=sflag, size = 0x4, scoped, tag = 'scoped memory for tpu_custom_call.1']
    #allocation4 [shape = 's32[1]{0}', space=sflag, size = 0x4, scoped, tag = 'scoped memory for tpu_custom_call.1']
    #allocation5 [shape = 'u8[8192]{0}', space=vmem, size = 0x2000, scoped, tag = 'input window, operand 1, single buffered']
    #allocation6 [shape = 's32[1]{0}', space=sflag, size = 0x4, scoped, tag = 'scoped memory for tpu_custom_call.1']
    #allocation7 [shape = 'u8[2048]{0}', space=vmem, size = 0x800, scoped, tag = 'output window, operand 0, single buffered']
    %7 = vsyncpa [#allocation3], 0
    %8 = vsyncpa [#allocation6], 0
    %9 = vsyncpa [#allocation4], 0
    // Predicated region
    $region2: #{tpu_custom_call.1} parent=1 // pred_check
      _
    $region3: #{tpu_custom_call.1} parent=1 // pred_check_branch
      %11 = sbr.rel (0) target = $region5
    $region4: #{tpu_custom_call.1} parent=1 // pred_region
      %s13 = ssub.s32 64, 64
      %14 = vsyncadd [#allocation3], %s13
      %s16 = sshll.u32 [#allocation2], 4
      %s17 = int_to_ptr.vmem [resolvable:$true] %s16
      %19 = dma.hbm_to_vmem [thread:$0]  %s0, 64, %s17, [#allocation3]
    $region5: #{tpu_custom_call.1} parent=1 // pred_fallthru
      _
    // Predicated region
    $region6: #{tpu_custom_call.1} parent=1 // pred_check
      _
    $region7: #{tpu_custom_call.1} parent=1 // pred_check_branch
      %21 = sbr.rel (0) target = $region9
    $region8: #{tpu_custom_call.1} parent=1 // pred_region
      %s23 = ssub.s32 256, 256
      %24 = vsyncadd [#allocation6], %s23
      %s26 = sshll.u32 [#allocation5], 4
      %s27 = int_to_ptr.vmem [resolvable:$true] %s26
      %29 = dma.hbm_to_vmem [thread:$0]  %s1, 256, %s27, [#allocation6]
    $region9: #{tpu_custom_call.1} parent=1 // pred_fallthru
      _
    // Predicated region
    $region10: #{tpu_custom_call.1} parent=1 // pred_check
      _
    $region11: #{tpu_custom_call.1} parent=1 // pred_check_branch
      %31 = sbr.rel (0) target = $region13
    $region12: #{tpu_custom_call.1} parent=1 // pred_region
      %32 = dma.done [#allocation3], 64
    $region13: #{tpu_custom_call.1} parent=1 // pred_fallthru
      _
    // Predicated region
    $region14: #{tpu_custom_call.1} parent=1 // pred_check
      _
    $region15: #{tpu_custom_call.1} parent=1 // pred_check_branch
      %34 = sbr.rel (0) target = $region17
    $region16: #{tpu_custom_call.1} parent=1 // pred_region
      %35 = dma.done [#allocation6], 256
    $region17: #{tpu_custom_call.1} parent=1 // pred_fallthru
      _
    %v36 = vld [vmem:[#allocation2] sm:$0xf]
    %v37 = vld [vmem:[#allocation5] ss:$4 sm:$0xf]
    %s38 = scalar_lea.vmem [#allocation5], 1
    %v39 = vld [vmem:[%s38] ss:$4 sm:$0xf]
    %s40 = scalar_lea.vmem [#allocation5], 2
    %v41 = vld [vmem:[%s40] ss:$4 sm:$0xf]
    %vm42 = vcmp.ge.f32.partialorder %v36, %v37
    %vm43 = vcmp.le.f32.partialorder %v36, %v39
    %vm44 = vmand %vm42, %vm43
    %v45 = vsel %vm44, %v41, %v36
    %v46 = vlaneseq
    %vm47 = vcmp.ge.s32.totalorder %v46, 0
    %vm48 = vcmp.lt.s32.totalorder %v46, 512
    %vm49 = vmand %vm47, %vm48
    %50 = vst.msk [vmem:[#allocation7] sm:$0xf] %vm49, %v45
    // Predicated region
    $region18: #{tpu_custom_call.1} parent=1 // pred_check
      _
    $region19: #{tpu_custom_call.1} parent=1 // pred_check_branch
      %52 = sbr.rel (0) target = $region21
    $region20: #{tpu_custom_call.1} parent=1 // pred_region
      %s54 = ssub.s32 64, 64
      %55 = vsyncadd [#allocation4], %s54
      %s57 = sshll.u32 [#allocation7], 4
      %s58 = int_to_ptr.vmem [resolvable:$true] %s57
      %60 = dma.vmem_to_hbm [thread:$0]  %s58, 64, %s2, [#allocation4]
    $region21: #{tpu_custom_call.1} parent=1 // pred_fallthru
      _
    // Predicated region
    $region22: #{tpu_custom_call.1} parent=1 // pred_check
      _
    $region23: #{tpu_custom_call.1} parent=1 // pred_check_branch
      %62 = sbr.rel (0) target = $region25
    $region24: #{tpu_custom_call.1} parent=1 // pred_region
      %63 = dma.done [#allocation4], 64
    $region25: #{tpu_custom_call.1} parent=1 // pred_fallthru
      _
    %64 = vsyncpa [#allocation3], 1
    %65 = vsyncpa [#allocation6], 1
    %66 = vsyncpa [#allocation4], 1

</llo_original>
